<compile_context>
chip_gen: v7x
topology: tpu7x:2x2x1
jax: 0.10.0
libtpu: 0.0.40
codegen_flags: <defaults>
</compile_context>

<pallas_src>
import jax
import jax.numpy as jnp
from jax.experimental import pallas as pl
from jax.experimental.pallas import tpu as pltpu


# -------------------- Pallas kernel --------------------

def _momentum_linear_kernel(x_ref, w_ref, b_ref, o_ref):
    """y = x @ W + b for one row-tile.

    x_ref: (TM, K)  w_ref: (K, N_pad)  b_ref: (1, N_pad)  o_ref: (TM, N_pad)
    """
    acc = jnp.dot(x_ref[...], w_ref[...], preferred_element_type=jnp.float32)
    o_ref[...] = (acc + b_ref[...]).astype(o_ref.dtype)


# -------------------- wrapper --------------------

def _round_up(x, m):
    return (x + m - 1) // m * m


def _choose_row_tile(R, n_pad, out_itemsize):
    """Pick the row tile so each output block is ~1 MiB and the grid keeps >= 2 steps."""
    target_bytes = 1 << 20  # ~1 MiB output block: amortizes grid overhead, ~85%+ roofline
    tm = target_bytes // (n_pad * out_itemsize)
    tm = max(128, min(2048, tm))
    tm = _round_up(tm, 8)
    # Keep at least 2 grid steps when there is enough work so v7x's 2nd TC gets a share.
    if R > 256:
        tm = min(tm, _round_up(pl.cdiv(R, 2), 8))
    if tm >= R:
        tm = R  # single block equal to the full row dim (no 8-alignment needed then)
    return tm


def momentum_embedder_forward(momentum, weight, bias, *, out_dtype=jnp.float32):
    """MomentumEmbedder.forward: emb = momentum @ weight + bias.

    momentum: [..., 3]
    weight:   [3, n_embed]   (stored input-major, so y = x @ W + b == nn.Linear)
    bias:     [n_embed]
    returns:  [..., n_embed] in out_dtype (default float32, matching nn.Linear)
    """
    *lead, K = momentum.shape
    N = weight.shape[1]

    x = momentum.reshape(-1, K).astype(jnp.float32)
    R = x.shape[0]

    if R == 0:  # empty leading dims
        return jnp.zeros((*lead, N), dtype=out_dtype)

    # Lane-dense output width: pad N up to a multiple of 128 (single slice at the end).
    N_pad = _round_up(N, 128)
    w = weight.astype(jnp.float32)
    b = bias.astype(jnp.float32)
    if N_pad != N:
        w = jnp.pad(w, ((0, 0), (0, N_pad - N)))
        b = jnp.pad(b, (0, N_pad - N))
    b = b.reshape(1, N_pad)

    out_itemsize = jnp.dtype(out_dtype).itemsize
    TM = _choose_row_tile(R, N_pad, out_itemsize)
    grid = pl.cdiv(R, TM)  # ragged last tile handled (masked stores) by Pallas

    # Explicit VMEM budget: double-buffered x/out blocks + (conservatively 2x) W and b.
    vmem_bytes = (
        2 * (TM * K * 4 + TM * N_pad * out_itemsize)
        + 2 * (K * N_pad * 4 + N_pad * 4)
    )
    vmem_limit = int(min(64 << 20, max(16 << 20, 2 * vmem_bytes)))  # safe on v7x (64 MiB)

    out = pl.pallas_call(
        _momentum_linear_kernel,
        out_shape=jax.ShapeDtypeStruct((R, N_pad), out_dtype),
        grid=(grid,),
        in_specs=[
            pl.BlockSpec((TM, K), lambda i: (i, 0)),      # row tile of momentum (K=3 full dim)
            pl.BlockSpec((K, N_pad), lambda i: (0, 0)),   # weight, resident across steps
            pl.BlockSpec((1, N_pad), lambda i: (0, 0)),   # bias, resident across steps
        ],
        out_specs=pl.BlockSpec((TM, N_pad), lambda i: (i, 0)),
        compiler_params=pltpu.CompilerParams(
            dimension_semantics=("parallel",),            # shard row tiles across TCs (v7x)
            vmem_limit_bytes=vmem_limit,
        ),
    )(x, w, b)

    if N_pad != N:
        out = out[:, :N]
    return out.reshape(*lead, N)


# -------------------- demo / self-check --------------------

if __name__ == "__main__":
    key = jax.random.PRNGKey(0)
    k_x, k_w, k_b, k_x2 = jax.random.split(key, 4)

    # Case 1: small batch, lane-dense n_embed (the module's typical use).
    B = 2
    N_EMBED = 128
    momentum = jax.random.normal(k_x, (B, 3), dtype=jnp.float32)
    weight = (0.02 * jax.random.normal(k_w, (3, N_EMBED))).astype(jnp.float32)
    bias = (0.02 * jax.random.normal(k_b, (N_EMBED,))).astype(jnp.float32)

    emb = jax.block_until_ready(momentum_embedder_forward(momentum, weight, bias))
    ref = momentum @ weight + bias[None, :]
    assert emb.shape == (B, N_EMBED), emb.shape
    assert bool(jnp.allclose(emb, ref, atol=1e-5, rtol=1e-5)), float(jnp.max(jnp.abs(emb - ref)))

    # Case 2: extra leading dims, ragged last row-tile, n_embed not a multiple of 128.
    N2 = 96
    momentum2 = jax.random.normal(k_x2, (4, 77, 3), dtype=jnp.float32)
    weight2 = (0.02 * jax.random.normal(k_w, (3, N2))).astype(jnp.float32)
    bias2 = (0.02 * jax.random.normal(k_b, (N2,))).astype(jnp.float32)

    emb2 = jax.block_until_ready(momentum_embedder_forward(momentum2, weight2, bias2))
    ref2 = momentum2 @ weight2 + bias2
    assert emb2.shape == (4, 77, N2), emb2.shape
    assert bool(jnp.allclose(emb2, ref2, atol=1e-5, rtol=1e-5)), float(jnp.max(jnp.abs(emb2 - ref2)))

    print("KERNEL_OK")
</pallas_src>

<mosaic_0001>
module attributes {stable_mosaic.version = 11 : i64} {
  func.func @_momentum_linear_kernel(%arg0: i32, %arg1: memref<2x3xf32, #tpu.memory_space<vmem>>, %arg2: memref<3x128xf32, #tpu.memory_space<vmem>>, %arg3: memref<1x128xf32, #tpu.memory_space<vmem>>, %arg4: memref<2x128xf32, #tpu.memory_space<vmem>>) attributes {dimension_semantics = [#tpu.dimension_semantics<parallel>], iteration_bounds = array<i64: 1>, scalar_prefetch = 0 : i64, scratch_operands = 0 : i64, tpu.core_type = #tpu.core_type<tc>, window_params = [{transform_indices = @transform_0, window_bounds = array<i64: 2, 3>}, {pipeline_mode = #tpu.pipeline_mode<synchronous>, transform_indices = @transform_1, window_bounds = array<i64: 3, 128>}, {pipeline_mode = #tpu.pipeline_mode<synchronous>, transform_indices = @transform_2, window_bounds = array<i64: 1, 128>}, {transform_indices = @transform_3, window_bounds = array<i64: 2, 128>}]} {
    %c0 = arith.constant 0 : index
    %c0_0 = arith.constant 0 : index
    %0 = vector.load %arg1[%c0, %c0_0] : memref<2x3xf32, #tpu.memory_space<vmem>>, vector<2x3xf32>
    %c0_1 = arith.constant 0 : index
    %c0_2 = arith.constant 0 : index
    %1 = vector.load %arg2[%c0_1, %c0_2] : memref<3x128xf32, #tpu.memory_space<vmem>>, vector<3x128xf32>
    %cst = arith.constant dense<0.000000e+00> : vector<2x128xf32>
    %2 = tpu.matmul %0, %1, %cst {dimension_numbers = #tpu.dot_dimension_numbers<[1], [0], [0], [1], [0, 0, 1, 1], [], []>} : vector<2x3xf32>, vector<3x128xf32>, vector<2x128xf32> -> vector<2x128xf32>
    %c0_3 = arith.constant 0 : index
    %c0_4 = arith.constant 0 : index
    %3 = vector.load %arg3[%c0_3, %c0_4] : memref<1x128xf32, #tpu.memory_space<vmem>>, vector<1x128xf32>
    %4 = vector.broadcast %3 : vector<1x128xf32> to vector<2x128xf32>
    %5 = arith.addf %2, %4 : vector<2x128xf32>
    %c0_5 = arith.constant 0 : index
    %c0_6 = arith.constant 0 : index
    %6 = vector.load %arg4[%c0_5, %c0_6] : memref<2x128xf32, #tpu.memory_space<vmem>>, vector<2x128xf32>
    tpu.vector_store %arg4[%c0_5, %c0_6], %5 {strides = array<i32>} : memref<2x128xf32, #tpu.memory_space<vmem>>, vector<2x128xf32>,
    return
  }
  func.func @transform_0(%arg0: i32) -> (i32, i32) {
    %c0_i32 = arith.constant 0 : i32
    %c0_i32_0 = arith.constant 0 : i32
    return %arg0, %c0_i32 : i32, i32
  }
  func.func @transform_1(%arg0: i32) -> (i32, i32) {
    %c0_i32 = arith.constant 0 : i32
    %c0_i32_0 = arith.constant 0 : i32
    %c0_i32_1 = arith.constant 0 : i32
    return %c0_i32, %c0_i32_0 : i32, i32
  }
  func.func @transform_2(%arg0: i32) -> (i32, i32) {
    %c0_i32 = arith.constant 0 : i32
    %c0_i32_0 = arith.constant 0 : i32
    %c0_i32_1 = arith.constant 0 : i32
    return %c0_i32, %c0_i32_0 : i32, i32
  }
  func.func @transform_3(%arg0: i32) -> (i32, i32) {
    %c0_i32 = arith.constant 0 : i32
    %c0_i32_0 = arith.constant 0 : i32
    return %arg0, %c0_i32 : i32, i32
  }
}

</mosaic_0001>

<llo_original>
// kernel: tpu_custom_call.1
$region0: #{tpu_custom_call.1}
  #allocation0 [shape = 'u32[]', space=smem, size = 0x4, offset = 0x4, fixed_abs, tag = 'smem constant byte address 0x4 - core index']
  #allocation1 [shape = 'u32[144,128]{1,0:T(1,128)}', space=vmem, size = 0x12000, scoped, tag = 'internal scratch']
  %s0 = inlined_call_operand.hbm [shape: f32[2,3], index: 0, kind: input, shape index: {}]
  %s1 = inlined_call_operand.hbm [shape: f32[3,128], index: 1, kind: input, shape index: {}]
  %s2 = inlined_call_operand.vmem [shape: f32[1,128], index: 2, kind: input, shape index: {}]
  %s3 = inlined_call_operand.hbm [shape: f32[2,128], index: 3, kind: output, shape index: {}]
  %s4 = sld [smem:[#allocation0]]
  $region30: #{tpu_custom_call.1} parent=0
    _
  %s6 = ssub.s32 1, %s4
  %s7 = scalar_select 0, %s6, %s4
  $region1: #{tpu_custom_call.1} parent=0
    #allocation2 [shape = 'u8[1024]{0}', space=vmem, size = 0x400, scoped, tag = 'input window, operand 0, single buffered']
    #allocation3 [shape = 's32[1]{0}', space=sflag, size = 0x4, scoped, tag = 'scoped memory for tpu_custom_call.1']
    #allocation4 [shape = 's32[1]{0}', space=sflag, size = 0x4, scoped, tag = 'scoped memory for tpu_custom_call.1']
    #allocation5 [shape = 'u8[2048]{0}', space=vmem, size = 0x800, scoped, tag = 'input window, operand 1, single buffered']
    #allocation6 [shape = 's32[1]{0}', space=sflag, size = 0x4, scoped, tag = 'scoped memory for tpu_custom_call.1']
    #allocation7 [shape = 'u8[1024]{0}', space=vmem, size = 0x400, scoped, tag = 'output window, operand 0, single buffered']
    %8 = vsyncpa [#allocation3], 0
    %9 = vsyncpa [#allocation6], 0
    %10 = vsyncpa [#allocation4], 0
    // Predicated region
    $region2: #{tpu_custom_call.1} parent=1 // pred_check
      _
    $region3: #{tpu_custom_call.1} parent=1 // pred_check_branch
      %12 = sbr.rel (0) target = $region5
    $region4: #{tpu_custom_call.1} parent=1 // pred_region
      %s14 = ssub.s32 32, 32
      %15 = vsyncadd [#allocation3], %s14
      %s17 = sshll.u32 [#allocation2], 4
      %s18 = int_to_ptr.vmem [resolvable:$true] %s17
      %20 = dma.hbm_to_vmem [thread:$0]  %s0, 32, %s18, [#allocation3]
    $region5: #{tpu_custom_call.1} parent=1 // pred_fallthru
      _
    // Predicated region
    $region6: #{tpu_custom_call.1} parent=1 // pred_check
      _
    $region7: #{tpu_custom_call.1} parent=1 // pred_check_branch
      %22 = sbr.rel (0) target = $region9
    $region8: #{tpu_custom_call.1} parent=1 // pred_region
      %s24 = ssub.s32 64, 64
      %25 = vsyncadd [#allocation6], %s24
      %s27 = sshll.u32 [#allocation5], 4
      %s28 = int_to_ptr.vmem [resolvable:$true] %s27
      %30 = dma.hbm_to_vmem [thread:$0]  %s1, 64, %s28, [#allocation6]
    $region9: #{tpu_custom_call.1} parent=1 // pred_fallthru
      _
    // Predicated region
    $region10: #{tpu_custom_call.1} parent=1 // pred_check
      _
    $region11: #{tpu_custom_call.1} parent=1 // pred_check_branch
      %32 = sbr.rel (0) target = $region13
    $region12: #{tpu_custom_call.1} parent=1 // pred_region
      _
    $region13: #{tpu_custom_call.1} parent=1 // pred_fallthru
      _
    // Predicated region
    $region14: #{tpu_custom_call.1} parent=1 // pred_check
      _
    $region15: #{tpu_custom_call.1} parent=1 // pred_check_branch
      %34 = sbr.rel (0) target = $region17
    $region16: #{tpu_custom_call.1} parent=1 // pred_region
      %35 = dma.done [#allocation3], 32
    $region17: #{tpu_custom_call.1} parent=1 // pred_fallthru
      _
    // Predicated region
    $region18: #{tpu_custom_call.1} parent=1 // pred_check
      _
    $region19: #{tpu_custom_call.1} parent=1 // pred_check_branch
      %37 = sbr.rel (0) target = $region21
    $region20: #{tpu_custom_call.1} parent=1 // pred_region
      %38 = dma.done [#allocation6], 64
    $region21: #{tpu_custom_call.1} parent=1 // pred_fallthru
      _
    %v39 = vld [vmem:[#allocation2] sm:$0x3]
    %v40 = vld [vmem:[#allocation5] sm:$0x7]
    %v41 = vld [vmem:[%s2] sm:$0x1]
    %v43 = vlaneseq
    %v44 = vshrl.u32 %v43, 7
    %v45 = vsub.s32 0, %v44
    %v46 = vrot.slane %v41, %v45
    %vm48 = vcmask 23552
    %v50 = vsel %vm48, %v39, 0
    %vm52 = vcmask 1042432
    %v54 = vsel %vm52, %v40, 0
    %56 = vmatprep.subr.mxu0 0.0
    %57 = vmatpush1.msra.mxu0 %v54
    %58 = vmatprep.subr.mxu0 0.0
    %59 = vmatpush1.msra.mxu0 0.0
    %60 = vmatprep.subr.mxu0 0.0
    %61 = vmatpush1.msra.mxu0 0.0
    %62 = vmatprep.subr.mxu0 0.0
    %63 = vmatpush1.msra.mxu0 0.0
    %64 = vmatprep.subr.mxu0 0.0
    %65 = vmatpush1.msra.mxu0 0.0
    %66 = vmatprep.subr.mxu0 0.0
    %67 = vmatpush1.msra.mxu0 0.0
    %68 = vmatprep.subr.mxu0 0.0
    %69 = vmatpush1.msra.mxu0 0.0
    %70 = vmatprep.subr.mxu0 0.0
    %71 = vmatpush1.msra.mxu0 0.0
    %72 = vmatprep.subr.mxu0 0.0
    %73 = vmatpush1.msra.mxu0 0.0
    %74 = vmatprep.subr.mxu0 0.0
    %75 = vmatpush1.msra.mxu0 0.0
    %76 = vmatprep.subr.mxu0 0.0
    %77 = vmatpush1.msra.mxu0 0.0
    %78 = vmatprep.subr.mxu0 0.0
    %79 = vmatpush1.msra.mxu0 0.0
    %80 = vmatprep.subr.mxu0 0.0
    %81 = vmatpush1.msra.mxu0 0.0
    %82 = vmatprep.subr.mxu0 0.0
    %83 = vmatpush1.msra.mxu0 0.0
    %84 = vmatprep.subr.mxu0 0.0
    %85 = vmatpush1.msra.mxu0 0.0
    %86 = vmatprep.subr.mxu0 0.0
    %87 = vmatpush1.msra.mxu0 0.0
    %88 = vmatprep.subr.mxu0 0.0
    %89 = vmatpush1.msra.mxu0 0.0
    %90 = vmatprep.subr.mxu0 0.0
    %91 = vmatpush1.msra.mxu0 0.0
    %92 = vmatprep.subr.mxu0 0.0
    %93 = vmatpush1.msra.mxu0 0.0
    %94 = vmatprep.subr.mxu0 0.0
    %95 = vmatpush1.msra.mxu0 0.0
    %96 = vmatprep.subr.mxu0 0.0
    %97 = vmatpush1.msra.mxu0 0.0
    %98 = vmatprep.subr.mxu0 0.0
    %99 = vmatpush1.msra.mxu0 0.0
    %100 = vmatprep.subr.mxu0 0.0
    %101 = vmatpush1.msra.mxu0 0.0
    %102 = vmatprep.subr.mxu0 0.0
    %103 = vmatpush1.msra.mxu0 0.0
    %104 = vmatprep.subr.mxu0 0.0
    %105 = vmatpush1.msra.mxu0 0.0
    %106 = vmatprep.subr.mxu0 0.0
    %107 = vmatpush1.msra.mxu0 0.0
    %108 = vmatprep.subr.mxu0 0.0
    %109 = vmatpush1.msra.mxu0 0.0
    %110 = vmatprep.subr.mxu0 0.0
    %111 = vmatpush1.msra.mxu0 0.0
    %112 = vmatprep.subr.mxu0 0.0
    %113 = vmatpush1.msra.mxu0 0.0
    %114 = vmatprep.subr.mxu0 0.0
    %115 = vmatpush1.msra.mxu0 0.0
    %116 = vmatprep.subr.mxu0 0.0
    %117 = vmatpush1.msra.mxu0 0.0
    %118 = vmatprep.subr.mxu0 0.0
    %119 = vmatpush1.msra.mxu0 0.0
    %120 = vmatprep.mubr.f32.mxu0 0.0
    %121 = vmatmul.mubr.f32.gmra.mrb[0].mxu0 %v50
    %v122 = vpop.f32.mrb[0].mxu0
    %v123 = vadd.f32 %v46, %v122
    %v124 = vpop.f32.mrb[0].mxu0
    %125 = vdwg.mxu0
    %126 = vst [vmem:[#allocation7] sm:$0x3] %v123
    // Predicated region
    $region22: #{tpu_custom_call.1} parent=1 // pred_check
      _
    $region23: #{tpu_custom_call.1} parent=1 // pred_check_branch
      %128 = sbr.rel (0) target = $region25
    $region24: #{tpu_custom_call.1} parent=1 // pred_region
      %s130 = ssub.s32 32, 32
      %131 = vsyncadd [#allocation4], %s130
      %s133 = sshll.u32 [#allocation7], 4
      %s134 = int_to_ptr.vmem [resolvable:$true] %s133
      %136 = dma.vmem_to_hbm [thread:$0]  %s134, 32, %s3, [#allocation4]
    $region25: #{tpu_custom_call.1} parent=1 // pred_fallthru
      _
    // Predicated region
    $region26: #{tpu_custom_call.1} parent=1 // pred_check
      _
    $region27: #{tpu_custom_call.1} parent=1 // pred_check_branch
      %138 = sbr.rel (0) target = $region29
    $region28: #{tpu_custom_call.1} parent=1 // pred_region
      %139 = dma.done [#allocation4], 32
    $region29: #{tpu_custom_call.1} parent=1 // pred_fallthru
      _
    %140 = vsyncpa [#allocation3], 1
    %141 = vsyncpa [#allocation6], 1
    %142 = vsyncpa [#allocation4], 1

</llo_original>
